<compile_context>
chip_gen: v7x
topology: tpu7x:2x2x1
jax: 0.10.0
libtpu: 0.0.40
codegen_flags: <defaults>
</compile_context>

<pallas_src>
import jax
import jax.numpy as jnp
from jax.experimental import pallas as pl
from jax.experimental.pallas import tpu as pltpu


def residual_block_kernel(x_ref, w1_ref, b1_ref, w2_ref, b2_ref, o_ref):
    # x_ref  : (1, H, L)   L = bb*C*W folded onto the lane axis (lane-dense)
    # w*_ref : (L, 3L)     3 ky taps concatenated along N; kx taps, horizontal
    #                      zero-pad and per-image block-diagonal pre-folded
    # b*_ref : (1, L)      bias tiled onto the lane layout (conv2: *0.1 baked)
    # o_ref  : (1, H, L)
    _, H, L = x_ref.shape
    x = x_ref[0].astype(jnp.float32)                       # (H, L)

    def conv3x3(a, w_ref, b_ref):
        # Single wide MXU matmul for all three ky taps.
        p = jnp.dot(a, w_ref[...], preferred_element_type=jnp.float32)  # (H, 3L)
        p0 = p[:, :L]            # ky = 0 tap: needs row h-1
        p1 = p[:, L:2 * L]       # ky = 1 tap: aligned
        p2 = p[:, 2 * L:]        # ky = 2 tap: needs row h+1
        zero_row = jnp.zeros((1, L), jnp.float32)
        # Row shifts (vertical taps + vertical zero padding) as static-slice
        # adds on the VPU instead of extra MXU shift-matrix matmuls.
        down = jnp.concatenate([zero_row, p0[:-1, :]], axis=0)   # out[h] = p0[h-1]
        up = jnp.concatenate([p2[1:, :], zero_row], axis=0)      # out[h] = p2[h+1]
        return down + p1 + up + b_ref[...]

    y = jnp.maximum(conv3x3(x, w1_ref, b1_ref), 0.0)        # relu(conv1(x))
    # conv2's 0.1 scale is already baked into w2/b2 at setup time.
    o_ref[0] = (conv3x3(y, w2_ref, b2_ref) + x).astype(o_ref.dtype)


def choose_batch_block(B, C, W):
    """Images per grid step so the lane axis is >= 128 wide (and divides B)."""
    bb = min(B, max(1, -(-128 // (C * W))))   # ceil(128 / (C*W)), capped at B
    while B % bb:
        bb -= 1
    return bb


def build_residual_block_params(w1, b1, w2, b2, *, batch_block, width):
    """Setup-time constant prep (hoisted out of the per-call jitted path).

    Returns lane-dense block-banded weights (L, 3L) and tiled biases (1, L)
    for both convs, with conv2's 0.1 scale baked in.  Lane ordering within one
    image block is c*W + w (channel-major, width-minor).
    """
    def banded_cat(w_hwio, scale):
        C = w_hwio.shape[-1]
        mats = []
        for ky in range(3):
            acc = jnp.zeros((C * width, C * width), jnp.float32)
            for kx in range(3):
                # shift[w_in, w_out] = 1  iff  w_in == w_out + kx - 1
                shift = jnp.eye(width, width, k=1 - kx, dtype=jnp.float32)
                acc = acc + jnp.kron(w_hwio[ky, kx].astype(jnp.float32), shift)
            # block-diagonal over the images stacked on the lane axis
            mats.append(jnp.kron(jnp.eye(batch_block, dtype=jnp.float32), acc))
        return jnp.concatenate(mats, axis=1) * scale          # (L, 3L)

    def tiled_bias(b, scale):
        return (jnp.tile(jnp.repeat(b.astype(jnp.float32), width), batch_block)
                .reshape(1, -1) * scale)                      # (1, L)

    return (banded_cat(w1, 1.0), tiled_bias(b1, 1.0),
            banded_cat(w2, 0.1), tiled_bias(b2, 0.1))


@jax.jit
def residual_block(x_nchw, wcat1, b1t, wcat2, b2t):
    """x_nchw: (B, C, H, W).  wcat*/b*t: precomputed by build_residual_block_params."""
    B, C, H, W = x_nchw.shape
    L = wcat1.shape[0]
    bb = L // (C * W)                       # images folded onto the lane axis
    nb = B // bb                            # grid steps

    # NCHW module boundary -> (nb, H, bb*C*W) lane-dense view.
    x2d = (x_nchw.reshape(nb, bb, C, H, W)
           .transpose(0, 3, 1, 2, 4)
           .reshape(nb, H, L))

    out2d = pl.pallas_call(
        residual_block_kernel,
        out_shape=jax.ShapeDtypeStruct((nb, H, L), x_nchw.dtype),
        grid_spec=pltpu.PrefetchScalarGridSpec(
            num_scalar_prefetch=0,
            grid=(nb,),
            in_specs=[
                pl.BlockSpec((1, H, L), lambda g: (g, 0, 0)),
                pl.BlockSpec((L, 3 * L), lambda g: (0, 0)),
                pl.BlockSpec((1, L), lambda g: (0, 0)),
                pl.BlockSpec((L, 3 * L), lambda g: (0, 0)),
                pl.BlockSpec((1, L), lambda g: (0, 0)),
            ],
            out_specs=pl.BlockSpec((1, H, L), lambda g: (g, 0, 0)),
        ),
        compiler_params=pltpu.CompilerParams(
            dimension_semantics=("parallel",)),
    )(x2d, wcat1, b1t, wcat2, b2t)

    # Back to the NCHW module boundary.
    return (out2d.reshape(nb, H, bb, C, W)
            .transpose(0, 2, 3, 1, 4)
            .reshape(B, C, H, W))


def residual_block_ref(x_nchw, w1, b1, w2, b2):
    """Pure-JAX reference (lax conv), for correctness check."""
    def conv(x, w_hwio, b):
        w_oihw = jnp.transpose(w_hwio, (3, 2, 0, 1))
        y = jax.lax.conv_general_dilated(
            x, w_oihw, window_strides=(1, 1), padding="SAME",
            dimension_numbers=("NCHW", "OIHW", "NCHW"))
        return y + b[None, :, None, None]

    out = jax.nn.relu(conv(x_nchw, w1, b1))
    out = conv(out, w2, b2) * 0.1
    return out + x_nchw


if __name__ == "__main__":
    B, C, H, W = 2, 4, 16, 16
    key = jax.random.PRNGKey(0)
    kx, kw1, kb1, kw2, kb2 = jax.random.split(key, 5)

    x = jax.random.normal(kx, (B, C, H, W), jnp.float32)
    # deterministic parameter init (roughly matching Conv2d's fan-in scaling)
    scale = 1.0 / (C * 9) ** 0.5
    w1 = jax.random.normal(kw1, (3, 3, C, C), jnp.float32) * scale  # HWIO
    b1 = jax.random.normal(kb1, (C,), jnp.float32) * scale
    w2 = jax.random.normal(kw2, (3, 3, C, C), jnp.float32) * scale
    b2 = jax.random.normal(kb2, (C,), jnp.float32) * scale

    # One-time constant prep (hoisted out of the per-call path).
    bb = choose_batch_block(B, C, W)
    wcat1, b1t, wcat2, b2t = build_residual_block_params(
        w1, b1, w2, b2, batch_block=bb, width=W)
    wcat1, b1t, wcat2, b2t = jax.block_until_ready((wcat1, b1t, wcat2, b2t))

    out = residual_block(x, wcat1, b1t, wcat2, b2t)
    out = jax.block_until_ready(out)

    ref = residual_block_ref(x, w1, b1, w2, b2)
    assert out.shape == (B, C, H, W)
    assert jnp.allclose(out, ref, atol=1e-4, rtol=1e-4), "mismatch vs reference"

    print("KERNEL_OK")
</pallas_src>

<mosaic_0001>
module attributes {stable_mosaic.version = 11 : i64} {
  func.func @residual_block_kernel(%arg0: i32, %arg1: memref<1x16x128xf32, #tpu.memory_space<vmem>>, %arg2: memref<128x384xf32, #tpu.memory_space<vmem>>, %arg3: memref<1x128xf32, #tpu.memory_space<vmem>>, %arg4: memref<128x384xf32, #tpu.memory_space<vmem>>, %arg5: memref<1x128xf32, #tpu.memory_space<vmem>>, %arg6: memref<1x16x128xf32, #tpu.memory_space<vmem>>) attributes {dimension_semantics = [#tpu.dimension_semantics<parallel>], iteration_bounds = array<i64: 1>, scalar_prefetch = 0 : i64, scratch_operands = 0 : i64, tpu.core_type = #tpu.core_type<tc>, window_params = [{transform_indices = @transform_0, window_bounds = array<i64: 1, 16, 128>}, {pipeline_mode = #tpu.pipeline_mode<synchronous>, transform_indices = @transform_1, window_bounds = array<i64: 128, 384>}, {pipeline_mode = #tpu.pipeline_mode<synchronous>, transform_indices = @transform_2, window_bounds = array<i64: 1, 128>}, {pipeline_mode = #tpu.pipeline_mode<synchronous>, transform_indices = @transform_3, window_bounds = array<i64: 128, 384>}, {pipeline_mode = #tpu.pipeline_mode<synchronous>, transform_indices = @transform_4, window_bounds = array<i64: 1, 128>}, {transform_indices = @transform_5, window_bounds = array<i64: 1, 16, 128>}]} {
    %c0 = arith.constant 0 : index
    %c0_0 = arith.constant 0 : index
    %c0_1 = arith.constant 0 : index
    %0 = vector.load %arg1[%c0, %c0_0, %c0_1] : memref<1x16x128xf32, #tpu.memory_space<vmem>>, vector<1x16x128xf32>
    %1 = vector.shape_cast %0 : vector<1x16x128xf32> to vector<16x128xf32>
    %c0_2 = arith.constant 0 : index
    %c0_3 = arith.constant 0 : index
    %2 = vector.load %arg2[%c0_2, %c0_3] : memref<128x384xf32, #tpu.memory_space<vmem>>, vector<128x384xf32>
    %cst = arith.constant dense<0.000000e+00> : vector<16x384xf32>
    %3 = tpu.matmul %1, %2, %cst {dimension_numbers = #tpu.dot_dimension_numbers<[1], [0], [0], [1], [0, 0, 1, 1], [], []>} : vector<16x128xf32>, vector<128x384xf32>, vector<16x384xf32> -> vector<16x384xf32>
    %4 = vector.extract_strided_slice %3 {offsets = [0, 0], sizes = [16, 128], strides = [1, 1]} : vector<16x384xf32> to vector<16x128xf32>
    %5 = vector.extract_strided_slice %3 {offsets = [0, 128], sizes = [16, 128], strides = [1, 1]} : vector<16x384xf32> to vector<16x128xf32>
    %6 = vector.extract_strided_slice %3 {offsets = [0, 256], sizes = [16, 128], strides = [1, 1]} : vector<16x384xf32> to vector<16x128xf32>
    %cst_4 = arith.constant 0.000000e+00 : f32
    %7 = vector.broadcast %cst_4 : f32 to vector<1x128xf32>
    %8 = vector.extract_strided_slice %4 {offsets = [0, 0], sizes = [15, 128], strides = [1, 1]} : vector<16x128xf32> to vector<15x128xf32>
    %9 = tpu.concatenate %7, %8 in 0 : vector<1x128xf32>, vector<15x128xf32> -> vector<16x128xf32>
    %10 = vector.extract_strided_slice %6 {offsets = [1, 0], sizes = [15, 128], strides = [1, 1]} : vector<16x128xf32> to vector<15x128xf32>
    %11 = tpu.concatenate %10, %7 in 0 : vector<15x128xf32>, vector<1x128xf32> -> vector<16x128xf32>
    %12 = arith.addf %9, %5 : vector<16x128xf32>
    %13 = arith.addf %12, %11 : vector<16x128xf32>
    %c0_5 = arith.constant 0 : index
    %c0_6 = arith.constant 0 : index
    %14 = vector.load %arg3[%c0_5, %c0_6] : memref<1x128xf32, #tpu.memory_space<vmem>>, vector<1x128xf32>
    %15 = vector.broadcast %14 : vector<1x128xf32> to vector<16x128xf32>
    %16 = arith.addf %13, %15 : vector<16x128xf32>
    %cst_7 = arith.constant 0.000000e+00 : f32
    %17 = vector.broadcast %cst_7 : f32 to vector<16x128xf32>
    %18 = arith.maximumf %16, %17 : vector<16x128xf32>
    %c0_8 = arith.constant 0 : index
    %c0_9 = arith.constant 0 : index
    %19 = vector.load %arg4[%c0_8, %c0_9] : memref<128x384xf32, #tpu.memory_space<vmem>>, vector<128x384xf32>
    %cst_10 = arith.constant dense<0.000000e+00> : vector<16x384xf32>
    %20 = tpu.matmul %18, %19, %cst_10 {dimension_numbers = #tpu.dot_dimension_numbers<[1], [0], [0], [1], [0, 0, 1, 1], [], []>} : vector<16x128xf32>, vector<128x384xf32>, vector<16x384xf32> -> vector<16x384xf32>
    %21 = vector.extract_strided_slice %20 {offsets = [0, 0], sizes = [16, 128], strides = [1, 1]} : vector<16x384xf32> to vector<16x128xf32>
    %22 = vector.extract_strided_slice %20 {offsets = [0, 128], sizes = [16, 128], strides = [1, 1]} : vector<16x384xf32> to vector<16x128xf32>
    %23 = vector.extract_strided_slice %20 {offsets = [0, 256], sizes = [16, 128], strides = [1, 1]} : vector<16x384xf32> to vector<16x128xf32>
    %cst_11 = arith.constant 0.000000e+00 : f32
    %24 = vector.broadcast %cst_11 : f32 to vector<1x128xf32>
    %25 = vector.extract_strided_slice %21 {offsets = [0, 0], sizes = [15, 128], strides = [1, 1]} : vector<16x128xf32> to vector<15x128xf32>
    %26 = tpu.concatenate %24, %25 in 0 : vector<1x128xf32>, vector<15x128xf32> -> vector<16x128xf32>
    %27 = vector.extract_strided_slice %23 {offsets = [1, 0], sizes = [15, 128], strides = [1, 1]} : vector<16x128xf32> to vector<15x128xf32>
    %28 = tpu.concatenate %27, %24 in 0 : vector<15x128xf32>, vector<1x128xf32> -> vector<16x128xf32>
    %29 = arith.addf %26, %22 : vector<16x128xf32>
    %30 = arith.addf %29, %28 : vector<16x128xf32>
    %c0_12 = arith.constant 0 : index
    %c0_13 = arith.constant 0 : index
    %31 = vector.load %arg5[%c0_12, %c0_13] : memref<1x128xf32, #tpu.memory_space<vmem>>, vector<1x128xf32>
    %32 = vector.broadcast %31 : vector<1x128xf32> to vector<16x128xf32>
    %33 = arith.addf %30, %32 : vector<16x128xf32>
    %34 = arith.addf %33, %1 : vector<16x128xf32>
    %c0_14 = arith.constant 0 : index
    %c0_15 = arith.constant 0 : index
    %c0_16 = arith.constant 0 : index
    %35 = vector.load %arg6[%c0_14, %c0_15, %c0_16] : memref<1x16x128xf32, #tpu.memory_space<vmem>>, vector<1x16x128xf32>
    %36 = vector.shape_cast %35 : vector<1x16x128xf32> to vector<16x128xf32>
    %37 = vector.shape_cast %34 : vector<16x128xf32> to vector<1x16x128xf32>
    tpu.vector_store %arg6[%c0_14, %c0_15, %c0_16], %37 {strides = array<i32>} : memref<1x16x128xf32, #tpu.memory_space<vmem>>, vector<1x16x128xf32>,
    return
  }
  func.func @transform_0(%arg0: i32) -> (i32, i32, i32) {
    %c0_i32 = arith.constant 0 : i32
    %c0_i32_0 = arith.constant 0 : i32
    %c0_i32_1 = arith.constant 0 : i32
    return %arg0, %c0_i32, %c0_i32_0 : i32, i32, i32
  }
  func.func @transform_1(%arg0: i32) -> (i32, i32) {
    %c0_i32 = arith.constant 0 : i32
    %c0_i32_0 = arith.constant 0 : i32
    %c0_i32_1 = arith.constant 0 : i32
    return %c0_i32, %c0_i32_0 : i32, i32
  }
  func.func @transform_2(%arg0: i32) -> (i32, i32) {
    %c0_i32 = arith.constant 0 : i32
    %c0_i32_0 = arith.constant 0 : i32
    %c0_i32_1 = arith.constant 0 : i32
    return %c0_i32, %c0_i32_0 : i32, i32
  }
  func.func @transform_3(%arg0: i32) -> (i32, i32) {
    %c0_i32 = arith.constant 0 : i32
    %c0_i32_0 = arith.constant 0 : i32
    %c0_i32_1 = arith.constant 0 : i32
    return %c0_i32, %c0_i32_0 : i32, i32
  }
  func.func @transform_4(%arg0: i32) -> (i32, i32) {
    %c0_i32 = arith.constant 0 : i32
    %c0_i32_0 = arith.constant 0 : i32
    %c0_i32_1 = arith.constant 0 : i32
    return %c0_i32, %c0_i32_0 : i32, i32
  }
  func.func @transform_5(%arg0: i32) -> (i32, i32, i32) {
    %c0_i32 = arith.constant 0 : i32
    %c0_i32_0 = arith.constant 0 : i32
    %c0_i32_1 = arith.constant 0 : i32
    return %arg0, %c0_i32, %c0_i32_0 : i32, i32, i32
  }
}

</mosaic_0001>

<llo_original>
// kernel: residual_block.1
$region0: #{residual_block.1}
  #allocation0 [shape = 'u32[]', space=smem, size = 0x4, offset = 0x4, fixed_abs, tag = 'smem constant byte address 0x4 - core index']
  #allocation1 [shape = 'u32[144,128]{1,0:T(1,128)}', space=vmem, size = 0x12000, scoped, tag = 'internal scratch']
  %s0 = inlined_call_operand.vmem [shape: f32[1,16,128], index: 0, kind: input, shape index: {}]
  %s1 = inlined_call_operand.vmem [shape: f32[128,384], index: 1, kind: input, shape index: {}]
  %s2 = inlined_call_operand.vmem [shape: f32[1,128], index: 2, kind: input, shape index: {}]
  %s3 = inlined_call_operand.hbm [shape: f32[128,384], index: 3, kind: input, shape index: {}]
  %s4 = inlined_call_operand.vmem [shape: f32[1,128], index: 4, kind: input, shape index: {}]
  %s5 = inlined_call_operand.vmem [shape: f32[1,16,128], index: 5, kind: output, shape index: {}]
  %s6 = sld [smem:[#allocation0]]
  $region34: #{residual_block.1} parent=0
    _
  %s8 = ssub.s32 1, %s6
  %s9 = scalar_select 0, %s8, %s6
  $region1: #{residual_block.1} parent=0
    #allocation2 [shape = 'u8[196608]{0}', space=vmem, size = 0x30000, scoped, tag = 'input window, operand 3, single buffered']
    #allocation3 [shape = 's32[1]{0}', space=sflag, size = 0x4, scoped, tag = 'scoped memory for residual_block.1']
    %10 = vsyncpa [#allocation3], 0
    // Predicated region
    $region2: #{residual_block.1} parent=1 // pred_check
      _
    $region3: #{residual_block.1} parent=1 // pred_check_branch
      %12 = sbr.rel (0) target = $region5
    $region4: #{residual_block.1} parent=1 // pred_region
      _
    $region5: #{residual_block.1} parent=1 // pred_fallthru
      _
    // Predicated region
    $region6: #{residual_block.1} parent=1 // pred_check
      _
    $region7: #{residual_block.1} parent=1 // pred_check_branch
      %14 = sbr.rel (0) target = $region9
    $region8: #{residual_block.1} parent=1 // pred_region
      _
    $region9: #{residual_block.1} parent=1 // pred_fallthru
      _
    // Predicated region
    $region10: #{residual_block.1} parent=1 // pred_check
      _
    $region11: #{residual_block.1} parent=1 // pred_check_branch
      %16 = sbr.rel (0) target = $region13
    $region12: #{residual_block.1} parent=1 // pred_region
      _
    $region13: #{residual_block.1} parent=1 // pred_fallthru
      _
    // Predicated region
    $region14: #{residual_block.1} parent=1 // pred_check
      _
    $region15: #{residual_block.1} parent=1 // pred_check_branch
      %18 = sbr.rel (0) target = $region17
    $region16: #{residual_block.1} parent=1 // pred_region
      %s20 = ssub.s32 6144, 6144
      %21 = vsyncadd [#allocation3], %s20
      %s22 = sshll.u32 [#allocation2], 4
      %s23 = int_to_ptr.vmem [resolvable:$true] %s22
      %28 = dma.hbm_to_vmem [thread:$0]  %s3, 6144, %s23, [#allocation3], 384, 384, 24
    $region17: #{residual_block.1} parent=1 // pred_fallthru
      _
    // Predicated region
    $region18: #{residual_block.1} parent=1 // pred_check
      _
    $region19: #{residual_block.1} parent=1 // pred_check_branch
      %30 = sbr.rel (0) target = $region21
    $region20: #{residual_block.1} parent=1 // pred_region
      _
    $region21: #{residual_block.1} parent=1 // pred_fallthru
      _
    // Predicated region
    $region22: #{residual_block.1} parent=1 // pred_check
      _
    $region23: #{residual_block.1} parent=1 // pred_check_branch
      %32 = sbr.rel (0) target = $region25
    $region24: #{residual_block.1} parent=1 // pred_region
      %33 = dma.done [#allocation3], 6144
    $region25: #{residual_block.1} parent=1 // pred_fallthru
      _
    %v34 = vld [vmem:[%s0] sm:$0xff]
    %v35 = vld [vmem:[%s0 + $0x8] sm:$0xff]
    %v36 = vld [vmem:[%s1] sm:$0xff]
    %v37 = vld [vmem:[%s1 + $0x8] sm:$0xff]
    %v38 = vld [vmem:[%s1 + $0x10] sm:$0xff]
    %v39 = vld [vmem:[%s1 + $0x18] sm:$0xff]
    %v40 = vld [vmem:[%s1 + $0x20] sm:$0xff]
    %v41 = vld [vmem:[%s1 + $0x28] sm:$0xff]
    %v42 = vld [vmem:[%s1 + $0x30] sm:$0xff]
    %v43 = vld [vmem:[%s1 + $0x38] sm:$0xff]
    %v44 = vld [vmem:[%s1 + $0x40] sm:$0xff]
    %v45 = vld [vmem:[%s1 + $0x48] sm:$0xff]
    %v46 = vld [vmem:[%s1 + $0x50] sm:$0xff]
    %v47 = vld [vmem:[%s1 + $0x58] sm:$0xff]
    %v48 = vld [vmem:[%s1 + $0x60] sm:$0xff]
    %v49 = vld [vmem:[%s1 + $0x68] sm:$0xff]
    %v50 = vld [vmem:[%s1 + $0x70] sm:$0xff]
    %v51 = vld [vmem:[%s1 + $0x78] sm:$0xff]
    %v52 = vld [vmem:[%s1 + $0x80] sm:$0xff]
    %v53 = vld [vmem:[%s1 + $0x88] sm:$0xff]
    %v54 = vld [vmem:[%s1 + $0x90] sm:$0xff]
    %v55 = vld [vmem:[%s1 + $0x98] sm:$0xff]
    %v56 = vld [vmem:[%s1 + $0xa0] sm:$0xff]
    %v57 = vld [vmem:[%s1 + $0xa8] sm:$0xff]
    %v58 = vld [vmem:[%s1 + $0xb0] sm:$0xff]
    %v59 = vld [vmem:[%s1 + $0xb8] sm:$0xff]
    %v60 = vld [vmem:[%s1 + $0xc0] sm:$0xff]
    %v61 = vld [vmem:[%s1 + $0xc8] sm:$0xff]
    %v62 = vld [vmem:[%s1 + $0xd0] sm:$0xff]
    %v63 = vld [vmem:[%s1 + $0xd8] sm:$0xff]
    %v64 = vld [vmem:[%s1 + $0xe0] sm:$0xff]
    %v65 = vld [vmem:[%s1 + $0xe8] sm:$0xff]
    %v66 = vld [vmem:[%s1 + $0xf0] sm:$0xff]
    %v67 = vld [vmem:[%s1 + $0xf8] sm:$0xff]
    %v68 = vld [vmem:[%s1 + $0x100] sm:$0xff]
    %v69 = vld [vmem:[%s1 + $0x108] sm:$0xff]
    %v70 = vld [vmem:[%s1 + $0x110] sm:$0xff]
    %v71 = vld [vmem:[%s1 + $0x118] sm:$0xff]
    %v72 = vld [vmem:[%s1 + $0x120] sm:$0xff]
    %v73 = vld [vmem:[%s1 + $0x128] sm:$0xff]
    %v74 = vld [vmem:[%s1 + $0x130] sm:$0xff]
    %v75 = vld [vmem:[%s1 + $0x138] sm:$0xff]
    %v76 = vld [vmem:[%s1 + $0x140] sm:$0xff]
    %v77 = vld [vmem:[%s1 + $0x148] sm:$0xff]
    %v78 = vld [vmem:[%s1 + $0x150] sm:$0xff]
    %v79 = vld [vmem:[%s1 + $0x158] sm:$0xff]
    %v80 = vld [vmem:[%s1 + $0x160] sm:$0xff]
    %v81 = vld [vmem:[%s1 + $0x168] sm:$0xff]
    %v82 = vld [vmem:[%s1 + $0x170] sm:$0xff]
    %v83 = vld [vmem:[%s1 + $0x178] sm:$0xff]
    %84 = vmatprep.subr.mxu0 %v37
    %85 = vmatpush1.msra.mxu0 %v36
    %86 = vmatprep.subr.mxu0 %v40
    %87 = vmatpush1.msra.mxu0 %v39
    %88 = vmatprep.subr.mxu0 %v43
    %89 = vmatpush1.msra.mxu0 %v42
    %90 = vmatprep.subr.mxu0 %v46
    %91 = vmatpush1.msra.mxu0 %v45
    %92 = vmatprep.subr.mxu0 %v49
    %93 = vmatpush1.msra.mxu0 %v48
    %94 = vmatprep.subr.mxu0 %v52
    %95 = vmatpush1.msra.mxu0 %v51
    %96 = vmatprep.subr.mxu0 %v55
    %97 = vmatpush1.msra.mxu0 %v54
    %98 = vmatprep.subr.mxu0 %v58
    %99 = vmatpush1.msra.mxu0 %v57
    %100 = vmatprep.subr.mxu0 %v61
    %101 = vmatpush1.msra.mxu0 %v60
    %102 = vmatprep.subr.mxu0 %v64
    %103 = vmatpush1.msra.mxu0 %v63
    %104 = vmatprep.subr.mxu0 %v67
    %105 = vmatpush1.msra.mxu0 %v66
    %106 = vmatprep.subr.mxu0 %v70
    %107 = vmatpush1.msra.mxu0 %v69
    %108 = vmatprep.subr.mxu0 %v73
    %109 = vmatpush1.msra.mxu0 %v72
    %110 = vmatprep.subr.mxu0 %v76
    %111 = vmatpush1.msra.mxu0 %v75
    %112 = vmatprep.subr.mxu0 %v79
    %113 = vmatpush1.msra.mxu0 %v78
    %114 = vmatprep.subr.mxu0 %v82
    %115 = vmatpush1.msra.mxu0 %v81
    %116 = vmatprep.subr.mxu0 0.0
    %117 = vmatpush1.msra.mxu0 0.0
    %118 = vmatprep.subr.mxu0 0.0
    %119 = vmatpush1.msra.mxu0 0.0
    %120 = vmatprep.subr.mxu0 0.0
    %121 = vmatpush1.msra.mxu0 0.0
    %122 = vmatprep.subr.mxu0 0.0
    %123 = vmatpush1.msra.mxu0 0.0
    %124 = vmatprep.subr.mxu0 0.0
    %125 = vmatpush1.msra.mxu0 0.0
    %126 = vmatprep.subr.mxu0 0.0
    %127 = vmatpush1.msra.mxu0 0.0
    %128 = vmatprep.subr.mxu0 0.0
    %129 = vmatpush1.msra.mxu0 0.0
    %130 = vmatprep.subr.mxu0 0.0
    %131 = vmatpush1.msra.mxu0 0.0
    %132 = vmatprep.subr.mxu0 0.0
    %133 = vmatpush1.msra.mxu0 0.0
    %134 = vmatprep.subr.mxu0 0.0
    %135 = vmatpush1.msra.mxu0 0.0
    %136 = vmatprep.subr.mxu0 0.0
    %137 = vmatpush1.msra.mxu0 0.0
    %138 = vmatprep.subr.mxu0 0.0
    %139 = vmatpush1.msra.mxu0 0.0
    %140 = vmatprep.subr.mxu0 0.0
    %141 = vmatpush1.msra.mxu0 0.0
    %142 = vmatprep.subr.mxu0 0.0
    %143 = vmatpush1.msra.mxu0 0.0
    %144 = vmatprep.subr.mxu0 0.0
    %145 = vmatpush1.msra.mxu0 0.0
    %146 = vmatprep.subr.mxu0 0.0
    %147 = vmatpush1.msra.mxu0 0.0
    %148 = vmatprep.mubr.f32.mxu0 0.0
    %149 = vmatmul.mubr.f32.gmra.mrb[0].mxu0 %v34
    %v150 = vpop.f32.mrb[0].mxu0
    %v151 = vadd.f32 0.0, %v150
    %v152 = vpop.f32.mrb[0].mxu0
    %v153 = vadd.f32 0.0, %v152
    %154 = vmatprep.mubr.f32.mxu0 0.0
    %155 = vmatmul.mubr.f32.gmra.mrb[0].mxu0 %v35
    %v156 = vpop.f32.mrb[0].mxu0
    %v157 = vadd.f32 0.0, %v156
    %v158 = vpop.f32.mrb[0].mxu0
    %v159 = vadd.f32 0.0, %v158
    %160 = vdwg.mxu0
    %161 = vmatprep.subr.mxu0 0.0
    %162 = vmatpush1.msra.mxu0 %v38
    %163 = vmatprep.subr.mxu0 0.0
    %164 = vmatpush1.msra.mxu0 %v41
    %165 = vmatprep.subr.mxu0 0.0
    %166 = vmatpush1.msra.mxu0 %v44
    %167 = vmatprep.subr.mxu0 0.0
    %168 = vmatpush1.msra.mxu0 %v47
    %169 = vmatprep.subr.mxu0 0.0
    %170 = vmatpush1.msra.mxu0 %v50
    %171 = vmatprep.subr.mxu0 0.0
    %172 = vmatpush1.msra.mxu0 %v53
    %173 = vmatprep.subr.mxu0 0.0
    %174 = vmatpush1.msra.mxu0 %v56
    %175 = vmatprep.subr.mxu0 0.0
    %176 = vmatpush1.msra.mxu0 %v59
    %177 = vmatprep.subr.mxu0 0.0
    %178 = vmatpush1.msra.mxu0 %v62
    %179 = vmatprep.subr.mxu0 0.0
    %180 = vmatpush1.msra.mxu0 %v65
    %181 = vmatprep.subr.mxu0 0.0
    %182 = vmatpush1.msra.mxu0 %v68
    %183 = vmatprep.subr.mxu0 0.0
    %184 = vmatpush1.msra.mxu0 %v71
    %185 = vmatprep.subr.mxu0 0.0
    %186 = vmatpush1.msra.mxu0 %v74
    %187 = vmatprep.subr.mxu0 0.0
    %188 = vmatpush1.msra.mxu0 %v77
    %189 = vmatprep.subr.mxu0 0.0
    %190 = vmatpush1.msra.mxu0 %v80
    %191 = vmatprep.subr.mxu0 0.0
    %192 = vmatpush1.msra.mxu0 %v83
    %193 = vmatprep.subr.mxu0 0.0
    %194 = vmatpush1.msra.mxu0 0.0
    %195 = vmatprep.subr.mxu0 0.0
    %196 = vmatpush1.msra.mxu0 0.0
    %197 = vmatprep.subr.mxu0 0.0
    %198 = vmatpush1.msra.mxu0 0.0
    %199 = vmatprep.subr.mxu0 0.0
    %200 = vmatpush1.msra.mxu0 0.0
    %201 = vmatprep.subr.mxu0 0.0
    %202 = vmatpush1.msra.mxu0 0.0
    %203 = vmatprep.subr.mxu0 0.0
    %204 = vmatpush1.msra.mxu0 0.0
    %205 = vmatprep.subr.mxu0 0.0
    %206 = vmatpush1.msra.mxu0 0.0
    %207 = vmatprep.subr.mxu0 0.0
    %208 = vmatpush1.msra.mxu0 0.0
    %209 = vmatprep.subr.mxu0 0.0
    %210 = vmatpush1.msra.mxu0 0.0
    %211 = vmatprep.subr.mxu0 0.0
    %212 = vmatpush1.msra.mxu0 0.0
    %213 = vmatprep.subr.mxu0 0.0
    %214 = vmatpush1.msra.mxu0 0.0
    %215 = vmatprep.subr.mxu0 0.0
    %216 = vmatpush1.msra.mxu0 0.0
    %217 = vmatprep.subr.mxu0 0.0
    %218 = vmatpush1.msra.mxu0 0.0
    %219 = vmatprep.subr.mxu0 0.0
    %220 = vmatpush1.msra.mxu0 0.0
    %221 = vmatprep.subr.mxu0 0.0
    %222 = vmatpush1.msra.mxu0 0.0
    %223 = vmatprep.subr.mxu0 0.0
    %224 = vmatpush1.msra.mxu0 0.0
    %225 = vmatprep.mubr.f32.mxu0 0.0
    %226 = vmatmul.mubr.f32.gmra.mrb[0].mxu0 %v34
    %v227 = vpop.f32.mrb[0].mxu0
    %v228 = vadd.f32 0.0, %v227
    %v229 = vpop.f32.mrb[0].mxu0
    %230 = vmatprep.mubr.f32.mxu0 0.0
    %231 = vmatmul.mubr.f32.gmra.mrb[0].mxu0 %v35
    %v232 = vpop.f32.mrb[0].mxu0
    %v233 = vadd.f32 0.0, %v232
    %v234 = vpop.f32.mrb[0].mxu0
    %235 = vdwg.mxu0
    %vm238 = vcmask 1040384
    %v239 = vrot.slane %v151, 7
    %v240 = vrot.slane %v157, 7
    %v241 = vsel %vm238, %v239, %v240
    %v244 = vsel %vm238, 0.0, %v239
    %vm247 = vcmask 1046528
    %v248 = vrot.slane %v228, 1
    %v249 = vrot.slane %v233, 1
    %v250 = vsel %vm247, %v248, %v249
    %v253 = vsel %vm247, %v249, 0.0
    %v254 = vadd.f32 %v244, %v153
    %v255 = vadd.f32 %v241, %v159
    %v256 = vadd.f32 %v254, %v250
    %v257 = vadd.f32 %v255, %v253
    %v258 = vld [vmem:[%s2] sm:$0x1]
    %v260 = vlaneseq
    %v261 = vshrl.u32 %v260, 7
    %v262 = vsub.s32 0, %v261
    %v263 = vrot.slane %v258, %v262
    %v265 = vadd.f32 %v256, %v263
    %v266 = vadd.f32 %v257, %v263
    %v267 = vmax.f32 %v265, 0.0
    %v268 = vmax.f32 %v266, 0.0
    %v269 = vld [vmem:[#allocation2] sm:$0xff]
    %v270 = vld [vmem:[#allocation2 + $0x8] sm:$0xff]
    %v271 = vld [vmem:[#allocation2 + $0x10] sm:$0xff]
    %v272 = vld [vmem:[#allocation2 + $0x18] sm:$0xff]
    %v273 = vld [vmem:[#allocation2 + $0x20] sm:$0xff]
    %v274 = vld [vmem:[#allocation2 + $0x28] sm:$0xff]
    %v275 = vld [vmem:[#allocation2 + $0x30] sm:$0xff]
    %v276 = vld [vmem:[#allocation2 + $0x38] sm:$0xff]
    %v277 = vld [vmem:[#allocation2 + $0x40] sm:$0xff]
    %v278 = vld [vmem:[#allocation2 + $0x48] sm:$0xff]
    %v279 = vld [vmem:[#allocation2 + $0x50] sm:$0xff]
    %v280 = vld [vmem:[#allocation2 + $0x58] sm:$0xff]
    %v281 = vld [vmem:[#allocation2 + $0x60] sm:$0xff]
    %v282 = vld [vmem:[#allocation2 + $0x68] sm:$0xff]
    %v283 = vld [vmem:[#allocation2 + $0x70] sm:$0xff]
    %v284 = vld [vmem:[#allocation2 + $0x78] sm:$0xff]
    %v285 = vld [vmem:[#allocation2 + $0x80] sm:$0xff]
    %v286 = vld [vmem:[#allocation2 + $0x88] sm:$0xff]
    %v287 = vld [vmem:[#allocation2 + $0x90] sm:$0xff]
    %v288 = vld [vmem:[#allocation2 + $0x98] sm:$0xff]
    %v289 = vld [vmem:[#allocation2 + $0xa0] sm:$0xff]
    %v290 = vld [vmem:[#allocation2 + $0xa8] sm:$0xff]
    %v291 = vld [vmem:[#allocation2 + $0xb0] sm:$0xff]
    %v292 = vld [vmem:[#allocation2 + $0xb8] sm:$0xff]
    %v293 = vld [vmem:[#allocation2 + $0xc0] sm:$0xff]
    %v294 = vld [vmem:[#allocation2 + $0xc8] sm:$0xff]
    %v295 = vld [vmem:[#allocation2 + $0xd0] sm:$0xff]
    %v296 = vld [vmem:[#allocation2 + $0xd8] sm:$0xff]
    %v297 = vld [vmem:[#allocation2 + $0xe0] sm:$0xff]
    %v298 = vld [vmem:[#allocation2 + $0xe8] sm:$0xff]
    %v299 = vld [vmem:[#allocation2 + $0xf0] sm:$0xff]
    %v300 = vld [vmem:[#allocation2 + $0xf8] sm:$0xff]
    %v301 = vld [vmem:[#allocation2 + $0x100] sm:$0xff]
    %v302 = vld [vmem:[#allocation2 + $0x108] sm:$0xff]
    %v303 = vld [vmem:[#allocation2 + $0x110] sm:$0xff]
    %v304 = vld [vmem:[#allocation2 + $0x118] sm:$0xff]
    %v305 = vld [vmem:[#allocation2 + $0x120] sm:$0xff]
    %v306 = vld [vmem:[#allocation2 + $0x128] sm:$0xff]
    %v307 = vld [vmem:[#allocation2 + $0x130] sm:$0xff]
    %v308 = vld [vmem:[#allocation2 + $0x138] sm:$0xff]
    %v309 = vld [vmem:[#allocation2 + $0x140] sm:$0xff]
    %v310 = vld [vmem:[#allocation2 + $0x148] sm:$0xff]
    %v311 = vld [vmem:[#allocation2 + $0x150] sm:$0xff]
    %v312 = vld [vmem:[#allocation2 + $0x158] sm:$0xff]
    %v313 = vld [vmem:[#allocation2 + $0x160] sm:$0xff]
    %v314 = vld [vmem:[#allocation2 + $0x168] sm:$0xff]
    %v315 = vld [vmem:[#allocation2 + $0x170] sm:$0xff]
    %v316 = vld [vmem:[#allocation2 + $0x178] sm:$0xff]
    %317 = vmatprep.subr.mxu0 %v270
    %318 = vmatpush1.msra.mxu0 %v269
    %319 = vmatprep.subr.mxu0 %v273
    %320 = vmatpush1.msra.mxu0 %v272
    %321 = vmatprep.subr.mxu0 %v276
    %322 = vmatpush1.msra.mxu0 %v275
    %323 = vmatprep.subr.mxu0 %v279
    %324 = vmatpush1.msra.mxu0 %v278
    %325 = vmatprep.subr.mxu0 %v282
    %326 = vmatpush1.msra.mxu0 %v281
    %327 = vmatprep.subr.mxu0 %v285
    %328 = vmatpush1.msra.mxu0 %v284
    %329 = vmatprep.subr.mxu0 %v288
    %330 = vmatpush1.msra.mxu0 %v287
    %331 = vmatprep.subr.mxu0 %v291
    %332 = vmatpush1.msra.mxu0 %v290
    %333 = vmatprep.subr.mxu0 %v294
    %334 = vmatpush1.msra.mxu0 %v293
    %335 = vmatprep.subr.mxu0 %v297
    %336 = vmatpush1.msra.mxu0 %v296
    %337 = vmatprep.subr.mxu0 %v300
    %338 = vmatpush1.msra.mxu0 %v299
    %339 = vmatprep.subr.mxu0 %v303
    %340 = vmatpush1.msra.mxu0 %v302
    %341 = vmatprep.subr.mxu0 %v306
    %342 = vmatpush1.msra.mxu0 %v305
    %343 = vmatprep.subr.mxu0 %v309
    %344 = vmatpush1.msra.mxu0 %v308
    %345 = vmatprep.subr.mxu0 %v312
    %346 = vmatpush1.msra.mxu0 %v311
    %347 = vmatprep.subr.mxu0 %v315
    %348 = vmatpush1.msra.mxu0 %v314
    %349 = vmatprep.subr.mxu0 0.0
    %350 = vmatpush1.msra.mxu0 0.0
    %351 = vmatprep.subr.mxu0 0.0
    %352 = vmatpush1.msra.mxu0 0.0
    %353 = vmatprep.subr.mxu0 0.0
    %354 = vmatpush1.msra.mxu0 0.0
    %355 = vmatprep.subr.mxu0 0.0
    %356 = vmatpush1.msra.mxu0 0.0
    %357 = vmatprep.subr.mxu0 0.0
    %358 = vmatpush1.msra.mxu0 0.0
    %359 = vmatprep.subr.mxu0 0.0
    %360 = vmatpush1.msra.mxu0 0.0
    %361 = vmatprep.subr.mxu0 0.0
    %362 = vmatpush1.msra.mxu0 0.0
    %363 = vmatprep.subr.mxu0 0.0
    %364 = vmatpush1.msra.mxu0 0.0
    %365 = vmatprep.subr.mxu0 0.0
    %366 = vmatpush1.msra.mxu0 0.0
    %367 = vmatprep.subr.mxu0 0.0
    %368 = vmatpush1.msra.mxu0 0.0
    %369 = vmatprep.subr.mxu0 0.0
    %370 = vmatpush1.msra.mxu0 0.0
    %371 = vmatprep.subr.mxu0 0.0
    %372 = vmatpush1.msra.mxu0 0.0
    %373 = vmatprep.subr.mxu0 0.0
    %374 = vmatpush1.msra.mxu0 0.0
    %375 = vmatprep.subr.mxu0 0.0
    %376 = vmatpush1.msra.mxu0 0.0
    %377 = vmatprep.subr.mxu0 0.0
    %378 = vmatpush1.msra.mxu0 0.0
    %379 = vmatprep.subr.mxu0 0.0
    %380 = vmatpush1.msra.mxu0 0.0
    %381 = vmatprep.mubr.f32.mxu0 0.0
    %382 = vmatmul.mubr.f32.gmra.mrb[0].mxu0 %v267
    %v383 = vpop.f32.mrb[0].mxu0
    %v384 = vadd.f32 0.0, %v383
    %v385 = vpop.f32.mrb[0].mxu0
    %v386 = vadd.f32 0.0, %v385
    %387 = vmatprep.mubr.f32.mxu0 0.0
    %388 = vmatmul.mubr.f32.gmra.mrb[0].mxu0 %v268
    %v389 = vpop.f32.mrb[0].mxu0
    %v390 = vadd.f32 0.0, %v389
    %v391 = vpop.f32.mrb[0].mxu0
    %v392 = vadd.f32 0.0, %v391
    %393 = vdwg.mxu0
    %394 = vmatprep.subr.mxu0 0.0
    %395 = vmatpush1.msra.mxu0 %v271
    %396 = vmatprep.subr.mxu0 0.0
    %397 = vmatpush1.msra.mxu0 %v274
    %398 = vmatprep.subr.mxu0 0.0
    %399 = vmatpush1.msra.mxu0 %v277
    %400 = vmatprep.subr.mxu0 0.0
    %401 = vmatpush1.msra.mxu0 %v280
    %402 = vmatprep.subr.mxu0 0.0
    %403 = vmatpush1.msra.mxu0 %v283
    %404 = vmatprep.subr.mxu0 0.0
    %405 = vmatpush1.msra.mxu0 %v286
    %406 = vmatprep.subr.mxu0 0.0
    %407 = vmatpush1.msra.mxu0 %v289
    %408 = vmatprep.subr.mxu0 0.0
    %409 = vmatpush1.msra.mxu0 %v292
    %410 = vmatprep.subr.mxu0 0.0
    %411 = vmatpush1.msra.mxu0 %v295
    %412 = vmatprep.subr.mxu0 0.0
    %413 = vmatpush1.msra.mxu0 %v298
    %414 = vmatprep.subr.mxu0 0.0
    %415 = vmatpush1.msra.mxu0 %v301
    %416 = vmatprep.subr.mxu0 0.0
    %417 = vmatpush1.msra.mxu0 %v304
    %418 = vmatprep.subr.mxu0 0.0
    %419 = vmatpush1.msra.mxu0 %v307
    %420 = vmatprep.subr.mxu0 0.0
    %421 = vmatpush1.msra.mxu0 %v310
    %422 = vmatprep.subr.mxu0 0.0
    %423 = vmatpush1.msra.mxu0 %v313
    %424 = vmatprep.subr.mxu0 0.0
    %425 = vmatpush1.msra.mxu0 %v316
    %426 = vmatprep.subr.mxu0 0.0
    %427 = vmatpush1.msra.mxu0 0.0
    %428 = vmatprep.subr.mxu0 0.0
    %429 = vmatpush1.msra.mxu0 0.0
    %430 = vmatprep.subr.mxu0 0.0
    %431 = vmatpush1.msra.mxu0 0.0
    %432 = vmatprep.subr.mxu0 0.0
    %433 = vmatpush1.msra.mxu0 0.0
    %434 = vmatprep.subr.mxu0 0.0
    %435 = vmatpush1.msra.mxu0 0.0
    %436 = vmatprep.subr.mxu0 0.0
    %437 = vmatpush1.msra.mxu0 0.0
    %438 = vmatprep.subr.mxu0 0.0
    %439 = vmatpush1.msra.mxu0 0.0
    %440 = vmatprep.subr.mxu0 0.0
    %441 = vmatpush1.msra.mxu0 0.0
    %442 = vmatprep.subr.mxu0 0.0
    %443 = vmatpush1.msra.mxu0 0.0
    %444 = vmatprep.subr.mxu0 0.0
    %445 = vmatpush1.msra.mxu0 0.0
    %446 = vmatprep.subr.mxu0 0.0
    %447 = vmatpush1.msra.mxu0 0.0
    %448 = vmatprep.subr.mxu0 0.0
    %449 = vmatpush1.msra.mxu0 0.0
    %450 = vmatprep.subr.mxu0 0.0
    %451 = vmatpush1.msra.mxu0 0.0
    %452 = vmatprep.subr.mxu0 0.0
    %453 = vmatpush1.msra.mxu0 0.0
    %454 = vmatprep.subr.mxu0 0.0
    %455 = vmatpush1.msra.mxu0 0.0
    %456 = vmatprep.subr.mxu0 0.0
    %457 = vmatpush1.msra.mxu0 0.0
    %458 = vmatprep.mubr.f32.mxu0 0.0
    %459 = vmatmul.mubr.f32.gmra.mrb[0].mxu0 %v267
    %v460 = vpop.f32.mrb[0].mxu0
    %v461 = vadd.f32 0.0, %v460
    %v462 = vpop.f32.mrb[0].mxu0
    %463 = vmatprep.mubr.f32.mxu0 0.0
    %464 = vmatmul.mubr.f32.gmra.mrb[0].mxu0 %v268
    %v465 = vpop.f32.mrb[0].mxu0
    %v466 = vadd.f32 0.0, %v465
    %v467 = vpop.f32.mrb[0].mxu0
    %468 = vdwg.mxu0
    %v471 = vrot.slane %v384, 7
    %v472 = vrot.slane %v390, 7
    %v473 = vsel %vm238, %v471, %v472
    %v476 = vsel %vm238, 0.0, %v471
    %v479 = vrot.slane %v461, 1
    %v480 = vrot.slane %v466, 1
    %v481 = vsel %vm247, %v479, %v480
    %v484 = vsel %vm247, %v480, 0.0
    %v485 = vadd.f32 %v476, %v386
    %v486 = vadd.f32 %v473, %v392
    %v487 = vadd.f32 %v485, %v481
    %v488 = vadd.f32 %v486, %v484
    %v489 = vld [vmem:[%s4] sm:$0x1]
    %v491 = vlaneseq
    %v492 = vshrl.u32 %v491, 7
    %v493 = vsub.s32 0, %v492
    %v494 = vrot.slane %v489, %v493
    %v496 = vadd.f32 %v487, %v494
    %v497 = vadd.f32 %v488, %v494
    %v498 = vadd.f32 %v496, %v34
    %v499 = vadd.f32 %v497, %v35
    %500 = vst [vmem:[%s5] sm:$0xff] %v498
    %501 = vst [vmem:[%s5 + $0x8] sm:$0xff] %v499
    // Predicated region
    $region26: #{residual_block.1} parent=1 // pred_check
      _
    $region27: #{residual_block.1} parent=1 // pred_check_branch
      %503 = sbr.rel (0) target = $region29
    $region28: #{residual_block.1} parent=1 // pred_region
      _
    $region29: #{residual_block.1} parent=1 // pred_fallthru
      _
    // Predicated region
    $region30: #{residual_block.1} parent=1 // pred_check
      _
    $region31: #{residual_block.1} parent=1 // pred_check_branch
      %505 = sbr.rel (0) target = $region33
    $region32: #{residual_block.1} parent=1 // pred_region
      _
    $region33: #{residual_block.1} parent=1 // pred_fallthru
      _
    %506 = vsyncpa [#allocation3], 1

</llo_original>
